<compile_context>
chip_gen: v7x
topology: tpu7x:2x2x1
jax: 0.10.0
libtpu: 0.0.40
codegen_flags: <defaults>
</compile_context>

<pallas_src>
import jax
import jax.numpy as jnp
from jax.experimental import pallas as pl
from jax.experimental.pallas import tpu as pltpu


def _attention_m_kernel(x_ref, w1_ref, b1_ref, w2_ref, b2_ref, o_ref):
    # x_ref:  (Nb, C, TL)  Nb batch rows, one L tile (lane axis = TL)
    # w1_ref: (C, C) bf16  torch Linear weight, used directly (left-multiply)
    # b1_ref: (C, 1) f32
    # w2_ref: (C, C) bf16
    # b2_ref: (C, 1) f32
    # o_ref:  (Nb, C, TL)
    w1 = w1_ref[...]
    w2 = w2_ref[...]
    b1 = b1_ref[...]
    b2 = b2_ref[...]
    nb = x_ref.shape[0]
    for b in range(nb):                                     # short, static unroll
        x = x_ref[b].astype(jnp.bfloat16)                   # (C, TL) bf16 MXU feed
        h = jnp.dot(w1, x, preferred_element_type=jnp.float32) + b1
        h = jnp.maximum(h, 0.0)                             # ReLU (f32)
        y = jnp.dot(w2, h.astype(jnp.bfloat16),
                    preferred_element_type=jnp.float32) + b2
        # Sigmoid on the EUP: exp + approximate reciprocal.
        sig = pl.reciprocal(1.0 + jnp.exp(-y), approx=True)
        o_ref[b] = sig.astype(o_ref.dtype)


def attention_m_forward(x, w1, b1, w2, b2, *, vmem_block_budget_bytes=8 << 20):
    """x: (N, C, T, V, M); w1, w2: (C, C) torch-Linear weights (out, in);
    b1, b2: (C,).  Returns (N, C, T, V, M) with the same dtype as x."""
    N, C, T, V, M = x.shape
    L = T * V * M

    # Native-layout view; no transpose, no copy.
    x3 = x.reshape(N, C, L)

    itemsize = jnp.dtype(x.dtype).itemsize
    # Per-lane, per-batch-row VMEM cost:
    #   2x double-buffered in + out blocks  -> 4 * itemsize * C
    #   in-kernel intermediates (bf16 x/h copies + f32 h/y) -> ~12 * C
    bytes_per_lane_row = C * (4 * itemsize + 12)
    lane_budget = max(128, ((vmem_block_budget_bytes // bytes_per_lane_row)
                            // 128) * 128)
    lane_budget = min(lane_budget, 32 * 1024)

    if L <= lane_budget:
        tile_l = L                                  # full-dim block (always legal)
        nb = max(1, min(N, lane_budget // L))       # also block over N for small L
    else:
        tile_l = lane_budget                        # multiple of 128
        nb = 1

    grid_n = pl.cdiv(N, nb)
    grid_l = pl.cdiv(L, tile_l)
    # Guarantee >= 2 grid steps so both v7x TensorCores get work.
    if grid_n * grid_l < 2:
        if N >= 2:
            nb = pl.cdiv(N, 2)
            grid_n = pl.cdiv(N, nb)
        elif L >= 256 and tile_l == L:
            tile_l = pl.cdiv(pl.cdiv(L, 2), 128) * 128
            grid_l = pl.cdiv(L, tile_l)

    # bf16 weights (MXU-native); f32 column-vector biases for the broadcast add.
    w1b = w1.astype(jnp.bfloat16)
    w2b = w2.astype(jnp.bfloat16)
    b1c = b1.reshape(C, 1).astype(jnp.float32)
    b2c = b2.reshape(C, 1).astype(jnp.float32)

    # Explicit VMEM limit: enough for blocks + intermediates, capped for v7x.
    block_bytes = nb * C * tile_l * itemsize
    interm_bytes = nb * C * tile_l * 12
    weight_bytes = 2 * C * C * 2 + 2 * C * 4
    vmem_needed = 4 * block_bytes + interm_bytes + weight_bytes
    vmem_limit = int(min(max(2 * vmem_needed + (2 << 20), 16 << 20), 48 << 20))

    cost = pl.CostEstimate(
        flops=4 * N * L * C * C,                    # two (C,C)x(C,L) matmuls
        transcendentals=2 * N * L * C,              # exp + reciprocal
        bytes_accessed=2 * N * L * C * itemsize + weight_bytes,
    )

    out3 = pl.pallas_call(
        _attention_m_kernel,
        out_shape=jax.ShapeDtypeStruct((N, C, L), x.dtype),
        grid_spec=pltpu.PrefetchScalarGridSpec(
            num_scalar_prefetch=0,
            grid=(grid_n, grid_l),
            in_specs=[
                # TODO(synk): add pipeline_mode=pl.Buffered(3) here if profiling
                # shows exposed DMA on the x input.
                pl.BlockSpec((nb, C, tile_l), lambda n, l: (n, 0, l)),  # x tile
                pl.BlockSpec((C, C), lambda n, l: (0, 0)),              # W1 (bf16)
                pl.BlockSpec((C, 1), lambda n, l: (0, 0)),              # b1
                pl.BlockSpec((C, C), lambda n, l: (0, 0)),              # W2 (bf16)
                pl.BlockSpec((C, 1), lambda n, l: (0, 0)),              # b2
            ],
            out_specs=pl.BlockSpec((nb, C, tile_l), lambda n, l: (n, 0, l)),
        ),
        compiler_params=pltpu.CompilerParams(
            dimension_semantics=("parallel", "parallel"),
            vmem_limit_bytes=vmem_limit,
        ),
        cost_estimate=cost,
    )(x3, w1b, b1c, w2b, b2c)

    # Free reshape back to the module's output layout (already channel-major).
    return out3.reshape(N, C, T, V, M)


def _reference_forward(x, w1, b1, w2, b2):
    x_perm = jnp.transpose(x, (0, 2, 3, 4, 1)).astype(jnp.float32)
    h = jnp.maximum(x_perm @ w1.T.astype(jnp.float32) + b1.astype(jnp.float32), 0.0)
    y = jax.nn.sigmoid(h @ w2.T.astype(jnp.float32) + b2.astype(jnp.float32))
    return jnp.transpose(y, (0, 4, 1, 2, 3)).astype(x.dtype)


if __name__ == "__main__":
    # Small shapes consistent with the module's forward: x is (N, C, T, V, M).
    # L = T*V*M = 600 is deliberately NOT a multiple of 128 to exercise the
    # ragged-tail / full-dim-tile paths.
    N, C, T, V, M = 2, 32, 12, 25, 2

    key = jax.random.PRNGKey(0)
    kx, kw1, kb1, kw2, kb2, kx4 = jax.random.split(key, 6)

    x = jax.random.normal(kx, (N, C, T, V, M), dtype=jnp.float32)
    lim = 1.0 / jnp.sqrt(C)
    w1 = jax.random.uniform(kw1, (C, C), minval=-lim, maxval=lim, dtype=jnp.float32)
    b1 = jax.random.uniform(kb1, (C,), minval=-lim, maxval=lim, dtype=jnp.float32)
    w2 = jax.random.uniform(kw2, (C, C), minval=-lim, maxval=lim, dtype=jnp.float32)
    b2 = jax.random.uniform(kb2, (C,), minval=-lim, maxval=lim, dtype=jnp.float32)

    # bf16 MXU operands + approx sigmoid -> compare to f32 ref with loose tol.
    ATOL = 3e-2

    ref = _reference_forward(x, w1, b1, w2, b2)

    # Path 1: full-L tile, N split across grid steps (megacore-friendly).
    out = attention_m_forward(x, w1, b1, w2, b2)
    out = jax.block_until_ready(out)
    assert out.shape == (N, C, T, V, M)
    assert jnp.allclose(out, ref, atol=ATOL, rtol=0.0), "mismatch (full tile)"

    # Path 2: small VMEM budget -> multi-tile along L with a ragged last block.
    out_tiled = attention_m_forward(x, w1, b1, w2, b2,
                                    vmem_block_budget_bytes=256 << 10)
    out_tiled = jax.block_until_ready(out_tiled)
    assert jnp.allclose(out_tiled, ref, atol=ATOL, rtol=0.0), "mismatch (tiled)"

    # Path 3: larger N -> Nb > 1 batch rows per grid step (unrolled in-kernel loop).
    x4 = jax.random.normal(kx4, (4, C, T, V, M), dtype=jnp.float32)
    ref4 = _reference_forward(x4, w1, b1, w2, b2)
    out4 = attention_m_forward(x4, w1, b1, w2, b2)
    out4 = jax.block_until_ready(out4)
    assert jnp.allclose(out4, ref4, atol=ATOL, rtol=0.0), "mismatch (N-blocked)"

    print("KERNEL_OK")
</pallas_src>

<mosaic_0001>
module attributes {stable_mosaic.version = 11 : i64} {
  func.func @_attention_m_kernel(%arg0: i32, %arg1: i32, %arg2: memref<1x32x600xf32, #tpu.memory_space<vmem>>, %arg3: memref<32x32xbf16, #tpu.memory_space<vmem>>, %arg4: memref<32x1xf32, #tpu.memory_space<vmem>>, %arg5: memref<32x32xbf16, #tpu.memory_space<vmem>>, %arg6: memref<32x1xf32, #tpu.memory_space<vmem>>, %arg7: memref<1x32x600xf32, #tpu.memory_space<vmem>>) attributes {dimension_semantics = [#tpu.dimension_semantics<parallel>, #tpu.dimension_semantics<parallel>], iteration_bounds = array<i64: 2, 1>, scalar_prefetch = 0 : i64, scratch_operands = 0 : i64, tpu.core_type = #tpu.core_type<tc>, window_params = [{transform_indices = @transform_0, window_bounds = array<i64: 1, 32, 600>}, {pipeline_mode = #tpu.pipeline_mode<synchronous>, transform_indices = @transform_1, window_bounds = array<i64: 32, 32>}, {pipeline_mode = #tpu.pipeline_mode<synchronous>, transform_indices = @transform_2, window_bounds = array<i64: 32, 1>}, {pipeline_mode = #tpu.pipeline_mode<synchronous>, transform_indices = @transform_3, window_bounds = array<i64: 32, 32>}, {pipeline_mode = #tpu.pipeline_mode<synchronous>, transform_indices = @transform_4, window_bounds = array<i64: 32, 1>}, {transform_indices = @transform_5, window_bounds = array<i64: 1, 32, 600>}]} {
    %c0 = arith.constant 0 : index
    %c0_0 = arith.constant 0 : index
    %0 = vector.load %arg3[%c0, %c0_0] : memref<32x32xbf16, #tpu.memory_space<vmem>>, vector<32x32xbf16>
    %c0_1 = arith.constant 0 : index
    %c0_2 = arith.constant 0 : index
    %1 = vector.load %arg5[%c0_1, %c0_2] : memref<32x32xbf16, #tpu.memory_space<vmem>>, vector<32x32xbf16>
    %c0_3 = arith.constant 0 : index
    %c0_4 = arith.constant 0 : index
    %2 = vector.load %arg4[%c0_3, %c0_4] : memref<32x1xf32, #tpu.memory_space<vmem>>, vector<32x1xf32>
    %c0_5 = arith.constant 0 : index
    %c0_6 = arith.constant 0 : index
    %3 = vector.load %arg6[%c0_5, %c0_6] : memref<32x1xf32, #tpu.memory_space<vmem>>, vector<32x1xf32>
    %c0_7 = arith.constant 0 : index
    %c0_8 = arith.constant 0 : index
    %c0_9 = arith.constant 0 : index
    %4 = vector.load %arg2[%c0_7, %c0_8, %c0_9] : memref<1x32x600xf32, #tpu.memory_space<vmem>>, vector<1x32x600xf32>
    %5 = vector.shape_cast %4 : vector<1x32x600xf32> to vector<32x600xf32>
    %6 = arith.truncf %5 : vector<32x600xf32> to vector<32x600xbf16>
    %cst = arith.constant dense<0.000000e+00> : vector<32x600xf32>
    %7 = tpu.matmul %0, %6, %cst {dimension_numbers = #tpu.dot_dimension_numbers<[1], [0], [0], [1], [0, 0, 1, 1], [], []>} : vector<32x32xbf16>, vector<32x600xbf16>, vector<32x600xf32> -> vector<32x600xf32>
    %8 = vector.broadcast %2 : vector<32x1xf32> to vector<32x600xf32>
    %9 = arith.addf %7, %8 : vector<32x600xf32>
    %cst_10 = arith.constant 0.000000e+00 : f32
    %10 = vector.broadcast %cst_10 : f32 to vector<32x600xf32>
    %11 = arith.maximumf %9, %10 : vector<32x600xf32>
    %12 = arith.truncf %11 : vector<32x600xf32> to vector<32x600xbf16>
    %cst_11 = arith.constant dense<0.000000e+00> : vector<32x600xf32>
    %13 = tpu.matmul %1, %12, %cst_11 {dimension_numbers = #tpu.dot_dimension_numbers<[1], [0], [0], [1], [0, 0, 1, 1], [], []>} : vector<32x32xbf16>, vector<32x600xbf16>, vector<32x600xf32> -> vector<32x600xf32>
    %14 = vector.broadcast %3 : vector<32x1xf32> to vector<32x600xf32>
    %15 = arith.addf %13, %14 : vector<32x600xf32>
    %cst_12 = arith.constant 0.000000e+00 : f32
    %16 = vector.broadcast %cst_12 : f32 to vector<32x600xf32>
    %17 = arith.subf %16, %15 : vector<32x600xf32>
    %18 = math.exp %17 : vector<32x600xf32>
    %cst_13 = arith.constant 1.000000e+00 : f32
    %19 = vector.broadcast %cst_13 : f32 to vector<32x600xf32>
    %20 = arith.addf %19, %18 : vector<32x600xf32>
    %21 = tpu.reciprocal %20 {approx = true} : vector<32x600xf32> -> vector<32x600xf32>
    %c0_14 = arith.constant 0 : index
    %c0_15 = arith.constant 0 : index
    %c0_16 = arith.constant 0 : index
    %22 = vector.load %arg7[%c0_14, %c0_15, %c0_16] : memref<1x32x600xf32, #tpu.memory_space<vmem>>, vector<1x32x600xf32>
    %23 = vector.shape_cast %22 : vector<1x32x600xf32> to vector<32x600xf32>
    %24 = vector.shape_cast %21 : vector<32x600xf32> to vector<1x32x600xf32>
    tpu.vector_store %arg7[%c0_14, %c0_15, %c0_16], %24 {strides = array<i32>} : memref<1x32x600xf32, #tpu.memory_space<vmem>>, vector<1x32x600xf32>,
    return
  }
  func.func @transform_0(%arg0: i32, %arg1: i32) -> (i32, i32, i32) {
    %c0_i32 = arith.constant 0 : i32
    %c0_i32_0 = arith.constant 0 : i32
    return %arg0, %c0_i32, %arg1 : i32, i32, i32
  }
  func.func @transform_1(%arg0: i32, %arg1: i32) -> (i32, i32) {
    %c0_i32 = arith.constant 0 : i32
    %c0_i32_0 = arith.constant 0 : i32
    %c0_i32_1 = arith.constant 0 : i32
    return %c0_i32, %c0_i32_0 : i32, i32
  }
  func.func @transform_2(%arg0: i32, %arg1: i32) -> (i32, i32) {
    %c0_i32 = arith.constant 0 : i32
    %c0_i32_0 = arith.constant 0 : i32
    %c0_i32_1 = arith.constant 0 : i32
    return %c0_i32, %c0_i32_0 : i32, i32
  }
  func.func @transform_3(%arg0: i32, %arg1: i32) -> (i32, i32) {
    %c0_i32 = arith.constant 0 : i32
    %c0_i32_0 = arith.constant 0 : i32
    %c0_i32_1 = arith.constant 0 : i32
    return %c0_i32, %c0_i32_0 : i32, i32
  }
  func.func @transform_4(%arg0: i32, %arg1: i32) -> (i32, i32) {
    %c0_i32 = arith.constant 0 : i32
    %c0_i32_0 = arith.constant 0 : i32
    %c0_i32_1 = arith.constant 0 : i32
    return %c0_i32, %c0_i32_0 : i32, i32
  }
  func.func @transform_5(%arg0: i32, %arg1: i32) -> (i32, i32, i32) {
    %c0_i32 = arith.constant 0 : i32
    %c0_i32_0 = arith.constant 0 : i32
    return %arg0, %c0_i32, %arg1 : i32, i32, i32
  }
}

</mosaic_0001>

<llo_original>
// kernel: tpu_custom_call.1
$region0: #{tpu_custom_call.1}
  #allocation0 [shape = 'u32[]', space=smem, size = 0x4, offset = 0x4, fixed_abs, tag = 'smem constant byte address 0x4 - core index']
  #allocation1 [shape = 'u32[144,128]{1,0:T(1,128)}', space=vmem, size = 0x12000, scoped, tag = 'internal scratch']
  %s0 = inlined_call_operand.hbm [shape: f32[2,32,600], index: 0, kind: input, shape index: {}]
  %s1 = inlined_call_operand.vmem [shape: bf16[32,32], index: 1, kind: input, shape index: {}]
  %s2 = inlined_call_operand.vmem [shape: f32[32,1], index: 2, kind: input, shape index: {}]
  %s3 = inlined_call_operand.vmem [shape: bf16[32,32], index: 3, kind: input, shape index: {}]
  %s4 = inlined_call_operand.vmem [shape: f32[32,1], index: 4, kind: input, shape index: {}]
  %s5 = inlined_call_operand.hbm [shape: f32[2,32,600], index: 5, kind: output, shape index: {}]
  %s6 = sld [smem:[#allocation0]]
  $region57: #{tpu_custom_call.1} parent=0
    _
  %s8 = ssub.s32 1, %s6
  %s9 = scalar_select 0, %s8, %s6
  $region1: #{tpu_custom_call.1} parent=0
    #allocation2 [shape = 'u8[163840]{0}', space=vmem, size = 0x28000, scoped, tag = 'input window, operand 0']
    #allocation3 [shape = 's32[2]{0}', space=sflag, size = 0x8, scoped, tag = 'scoped memory for tpu_custom_call.1']
    #allocation4 [shape = 's32[2]{0}', space=sflag, size = 0x8, scoped, tag = 'scoped memory for tpu_custom_call.1']
    #allocation5 [shape = 'u8[163840]{0}', space=vmem, size = 0x28000, scoped, tag = 'output window, operand 0']
    %10 = vsyncpa [#allocation3], 0
    %s11 = scalar_lea.sflag [#allocation3], 1
    %12 = vsyncpa %s11, 0
    %13 = vsyncpa [#allocation4], 0
    %s14 = scalar_lea.sflag [#allocation4], 1
    %15 = vsyncpa %s14, 0
    loop: start=0, step=1, limit=4
    $region2: #{tpu_custom_call.1} parent=1 // loop_pre_header
      _
    $region3: #{tpu_custom_call.1} parent=1 // loop_header
      %s17 = sphi 0, %s21
      %p18 = scmp.ge.s32.totalorder %s17, 4
      %s24 = sphi 0, %s36
      %s25 = sphi 0, %s32
      %s26 = sphi 0, %s24
      %s27 = sphi 0, %s25
      %s28 = sphi 0, %s26
      %s29 = sphi 0, %s27
      %s41 = sphi 0, %s43
      %s44 = sphi 0, %s41
      %s45 = sphi 0, %s44
      %s61 = sphi 0, %s45
      %s65 = sphi 0, %s65
      %s67 = sphi 0, %s65
      %s68 = sphi 0, %s67
      %s82 = sphi 0, %s68
      %s86 = sphi 0, %s86
      %s88 = sphi 0, %s86
      %s89 = sphi 0, %s88
      %s103 = sphi 0, %s89
      %s107 = sphi 0, %s107
      %s109 = sphi 0, %s107
      %s110 = sphi 0, %s109
      %s124 = sphi 0, %s110
      %s128 = sphi 0, %s128
      %s130 = sphi 0, %s128
      %s131 = sphi 0, %s130
      %s145 = sphi 0, %s131
      %s153 = sphi 0, %s155
      %s156 = sphi 0, %s153
      %s157 = sphi 0, %s156
      %s173 = sphi 0, %s157
    $region4: #{tpu_custom_call.1} parent=1 // loop_header_branch
      %20 = sbr.rel (%p18) target = $region8
    $region5: #{tpu_custom_call.1} parent=1 // loop_body
      %s22 = ssub.s32 %s17, 1
      %s23 = ssub.s32 %s17, 2
      %s30 = sadd.s32 1, %s25
      %p31 = scmp.ge.s32.totalorder %s30, 1
      %s32 = scalar_select %p31, 0, %s30
      %s33 = sadd.s32 1, %s24
      %s34 = scalar_select %p31, %s33, %s24
      %p35 = scmp.ge.s32.totalorder %s34, 2
      %s36 = scalar_select %p35, 0, %s34
      %s37 = ssub.s32 %s24, %s36
      %s38 = ssub.s32 %s25, %s32
      %s39 = sor.u32 %s37, %s38
      %p40 = scmp.eq.s32.totalorder %s39, 0
      %s42 = sadd.s32 %s41, 1
      %s43 = scalar_select %p40, %s41, %s42
      %p46 = pneg %p40
      %p47 = scmp.eq.s32.totalorder %s17, 1
      %p48 = por %p46, %p47
      %p49 = scmp.ne.s32.totalorder %s41, %s44
      %p50 = scmp.eq.s32.totalorder %s17, 0
      %p51 = por %p49, %p50
      %p52 = scmp.ne.s32.totalorder %s41, %s44
      %p53 = scmp.eq.s32.totalorder %s22, 1
      %p54 = por %p52, %p53
      %p55 = scmp.ne.s32.totalorder %s44, %s45
      %p56 = scmp.eq.s32.totalorder %s22, 0
      %p57 = por %p55, %p56
      %p58 = scmp.ne.s32.totalorder %s44, %s45
      %p59 = scmp.eq.s32.totalorder %s23, 1
      %p60 = por %p58, %p59
      %p62 = scmp.ne.s32.totalorder %s45, %s61
      %p63 = scmp.eq.s32.totalorder %s23, 0
      %p64 = por %p62, %p63
      %s66 = sadd.s32 %s65, 1
      %p69 = scmp.eq.s32.totalorder %s17, 1
      %p70 = scmp.ne.s32.totalorder %s65, %s67
      %p71 = scmp.eq.s32.totalorder %s17, 0
      %p72 = por %p70, %p71
      %p73 = scmp.ne.s32.totalorder %s65, %s67
      %p74 = scmp.eq.s32.totalorder %s22, 1
      %p75 = por %p73, %p74
      %p76 = scmp.ne.s32.totalorder %s67, %s68
      %p77 = scmp.eq.s32.totalorder %s22, 0
      %p78 = por %p76, %p77
      %p79 = scmp.ne.s32.totalorder %s67, %s68
      %p80 = scmp.eq.s32.totalorder %s23, 1
      %p81 = por %p79, %p80
      %p83 = scmp.ne.s32.totalorder %s68, %s82
      %p84 = scmp.eq.s32.totalorder %s23, 0
      %p85 = por %p83, %p84
      %s87 = sadd.s32 %s86, 1
      %p90 = scmp.eq.s32.totalorder %s17, 1
      %p91 = scmp.ne.s32.totalorder %s86, %s88
      %p92 = scmp.eq.s32.totalorder %s17, 0
      %p93 = por %p91, %p92
      %p94 = scmp.ne.s32.totalorder %s86, %s88
      %p95 = scmp.eq.s32.totalorder %s22, 1
      %p96 = por %p94, %p95
      %p97 = scmp.ne.s32.totalorder %s88, %s89
      %p98 = scmp.eq.s32.totalorder %s22, 0
      %p99 = por %p97, %p98
      %p100 = scmp.ne.s32.totalorder %s88, %s89
      %p101 = scmp.eq.s32.totalorder %s23, 1
      %p102 = por %p100, %p101
      %p104 = scmp.ne.s32.totalorder %s89, %s103
      %p105 = scmp.eq.s32.totalorder %s23, 0
      %p106 = por %p104, %p105
      %s108 = sadd.s32 %s107, 1
      %p111 = scmp.eq.s32.totalorder %s17, 1
      %p112 = scmp.ne.s32.totalorder %s107, %s109
      %p113 = scmp.eq.s32.totalorder %s17, 0
      %p114 = por %p112, %p113
      %p115 = scmp.ne.s32.totalorder %s107, %s109
      %p116 = scmp.eq.s32.totalorder %s22, 1
      %p117 = por %p115, %p116
      %p118 = scmp.ne.s32.totalorder %s109, %s110
      %p119 = scmp.eq.s32.totalorder %s22, 0
      %p120 = por %p118, %p119
      %p121 = scmp.ne.s32.totalorder %s109, %s110
      %p122 = scmp.eq.s32.totalorder %s23, 1
      %p123 = por %p121, %p122
      %p125 = scmp.ne.s32.totalorder %s110, %s124
      %p126 = scmp.eq.s32.totalorder %s23, 0
      %p127 = por %p125, %p126
      %s129 = sadd.s32 %s128, 1
      %p132 = scmp.eq.s32.totalorder %s17, 1
      %p133 = scmp.ne.s32.totalorder %s128, %s130
      %p134 = scmp.eq.s32.totalorder %s17, 0
      %p135 = por %p133, %p134
      %p136 = scmp.ne.s32.totalorder %s128, %s130
      %p137 = scmp.eq.s32.totalorder %s22, 1
      %p138 = por %p136, %p137
      %p139 = scmp.ne.s32.totalorder %s130, %s131
      %p140 = scmp.eq.s32.totalorder %s22, 0
      %p141 = por %p139, %p140
      %p142 = scmp.ne.s32.totalorder %s130, %s131
      %p143 = scmp.eq.s32.totalorder %s23, 1
      %p144 = por %p142, %p143
      %p146 = scmp.ne.s32.totalorder %s131, %s145
      %p147 = scmp.eq.s32.totalorder %s23, 0
      %p148 = por %p146, %p147
      %s149 = ssub.s32 %s24, %s36
      %s150 = ssub.s32 %s25, %s32
      %s151 = sor.u32 %s149, %s150
      %p152 = scmp.eq.s32.totalorder %s151, 0
      %s154 = sadd.s32 %s153, 1
      %s155 = scalar_select %p152, %s153, %s154
      %p158 = pneg %p152
      %p159 = scmp.eq.s32.totalorder %s17, 1
      %p160 = por %p158, %p159
      %p161 = scmp.ne.s32.totalorder %s153, %s156
      %p162 = scmp.eq.s32.totalorder %s17, 0
      %p163 = por %p161, %p162
      %p164 = scmp.ne.s32.totalorder %s153, %s156
      %p165 = scmp.eq.s32.totalorder %s22, 1
      %p166 = por %p164, %p165
      %p167 = scmp.ne.s32.totalorder %s156, %s157
      %p168 = scmp.eq.s32.totalorder %s22, 0
      %p169 = por %p167, %p168
      %p170 = scmp.ne.s32.totalorder %s156, %s157
      %p171 = scmp.eq.s32.totalorder %s23, 1
      %p172 = por %p170, %p171
      %p174 = scmp.ne.s32.totalorder %s157, %s173
      %p175 = scmp.eq.s32.totalorder %s23, 0
      %p176 = por %p174, %p175
      %p177 = scmp.le.s32.totalorder 1, %s17
      %p178 = scmp.lt.s32.totalorder %s17, 3
      %p179 = pnand %p177, %p178
      %p180 = pneg %p179
      // Predicated region
      $region9: #{tpu_custom_call.1} parent=5 // pred_check
        _
      $region10: #{tpu_custom_call.1} parent=5 // pred_check_branch
        %182 = sbr.rel (%p179) target = $region12
      $region11: #{tpu_custom_call.1} parent=5 // pred_region
        %s183 = ssub.s32 %s17, 1
        // Predicated region
        $region13: #{tpu_custom_call.1} parent=11 // pred_check
          %p184 = pneg %p78
        $region14: #{tpu_custom_call.1} parent=11 // pred_check_branch
          %186 = sbr.rel (%p184) target = $region16
        $region15: #{tpu_custom_call.1} parent=11 // pred_region
          _
        $region16: #{tpu_custom_call.1} parent=11 // pred_fallthru
          _
        // Predicated region
        $region17: #{tpu_custom_call.1} parent=11 // pred_check
          %p187 = pneg %p99
        $region18: #{tpu_custom_call.1} parent=11 // pred_check_branch
          %189 = sbr.rel (%p187) target = $region20
        $region19: #{tpu_custom_call.1} parent=11 // pred_region
          _
        $region20: #{tpu_custom_call.1} parent=11 // pred_fallthru
          _
        // Predicated region
        $region21: #{tpu_custom_call.1} parent=11 // pred_check
          %p190 = pneg %p120
        $region22: #{tpu_custom_call.1} parent=11 // pred_check_branch
          %192 = sbr.rel (%p190) target = $region24
        $region23: #{tpu_custom_call.1} parent=11 // pred_region
          _
        $region24: #{tpu_custom_call.1} parent=11 // pred_fallthru
          _
        // Predicated region
        $region25: #{tpu_custom_call.1} parent=11 // pred_check
          %p193 = pneg %p141
        $region26: #{tpu_custom_call.1} parent=11 // pred_check_branch
          %195 = sbr.rel (%p193) target = $region28
        $region27: #{tpu_custom_call.1} parent=11 // pred_region
          _
        $region28: #{tpu_custom_call.1} parent=11 // pred_fallthru
          _
      $region12: #{tpu_custom_call.1} parent=5 // pred_fallthru
        _
      %p196 = scmp.lt.s32.totalorder %s17, 2
      // Predicated region
      $region29: #{tpu_custom_call.1} parent=5 // pred_check
        %p197 = pneg %p196
      $region30: #{tpu_custom_call.1} parent=5 // pred_check_branch
        %199 = sbr.rel (%p197) target = $region32
      $region31: #{tpu_custom_call.1} parent=5 // pred_region
        // Predicated region
        $region33: #{tpu_custom_call.1} parent=31 // pred_check
          %p200 = pneg %p51
        $region34: #{tpu_custom_call.1} parent=31 // pred_check_branch
          %202 = sbr.rel (%p200) target = $region36
        $region35: #{tpu_custom_call.1} parent=31 // pred_region
          %s203 = sand.u32 %s41, 1
          %s204 = scalar_lea.sflag [#allocation3], %s203
          %s205 = sand.u32 %s41, 1
          %s206 = smul.addr %s205, 160
          %s207 = scalar_lea.vmem [#allocation2], %s206
          %s208 = smul.u32 5, %s25
          %s210 = ssub.s32 2560, 2560
          %211 = vsyncadd %s204, %s210
          %s212 = smul.addr %s24, 20
          %s213 = sadd.s32 %s208, %s212
          %s214 = smul.addr %s213, 128
          %s215 = scalar_lea.hbm %s0, %s214
          %s216 = sshll.u32 %s207, 4
          %s217 = int_to_ptr.vmem [resolvable:$true] %s216
          %222 = dma.hbm_to_vmem [thread:$0]  %s215, 2560, %s217, %s204, 640, 640, 40
        $region36: #{tpu_custom_call.1} parent=31 // pred_fallthru
          _
      $region32: #{tpu_custom_call.1} parent=5 // pred_fallthru
        _
      %p223 = scmp.le.s32.totalorder 1, %s17
      %p224 = scmp.lt.s32.totalorder %s17, 3
      %p225 = pnand %p223, %p224
      %p226 = pneg %p225
      // Predicated region
      $region37: #{tpu_custom_call.1} parent=5 // pred_check
        _
      $region38: #{tpu_custom_call.1} parent=5 // pred_check_branch
        %228 = sbr.rel (%p225) target = $region40
      $region39: #{tpu_custom_call.1} parent=5 // pred_region
        %s229 = ssub.s32 %s17, 1
        %s230 = sand.u32 %s44, 1
        %s231 = scalar_lea.sflag [#allocation3], %s230
        %s232 = sand.u32 %s44, 1
        %s233 = smul.addr %s232, 160
        %s234 = scalar_lea.vmem [#allocation2], %s233
        // Predicated region
        $region41: #{tpu_custom_call.1} parent=39 // pred_check
          %p235 = pneg %p57
        $region42: #{tpu_custom_call.1} parent=39 // pred_check_branch
          %237 = sbr.rel (%p235) target = $region44
        $region43: #{tpu_custom_call.1} parent=39 // pred_region
          %238 = dma.done %s231, 2560
        $region44: #{tpu_custom_call.1} parent=39 // pred_fallthru
          _
        %s239 = sand.u32 %s44, 1
        %s240 = scalar_lea.sflag [#allocation3], %s239
        %s241 = sand.u32 %s44, 1
        %s242 = smul.addr %s241, 160
        %s243 = scalar_lea.vmem [#allocation2], %s242
        %p244 = pneg %p57
        %p245 = pneg %p54
        %p246 = pneg %p78
        %p247 = pneg %p75
        %p248 = pneg %p99
        %p249 = pneg %p96
        %p250 = pneg %p120
        %p251 = pneg %p117
        %p252 = pneg %p141
        %p253 = pneg %p138
        %p254 = pneg %p169
        %p255 = pneg %p166
        %s256 = sand.u32 %s156, 1
        %s257 = scalar_lea.sflag [#allocation4], %s256
        %s258 = sand.u32 %s156, 1
        %s259 = smul.addr %s258, 160
        %s260 = scalar_lea.vmem [#allocation5], %s259
        %s261 = smul.u32 5, %s27
        %s262 = smul.u32 5, %s27
        %v264 = vld [vmem:[%s1] sm:$0xf]
        %v265 = vld [vmem:[%s1 + $0x4] sm:$0xf]
        %v266 = vld [vmem:[%s1 + $0x8] sm:$0xf]
        %v267 = vld [vmem:[%s1 + $0xc] sm:$0xf]
        %v268 = vld [vmem:[%s3] sm:$0xf]
        %v269 = vld [vmem:[%s3 + $0x4] sm:$0xf]
        %v270 = vld [vmem:[%s3 + $0x8] sm:$0xf]
        %v271 = vld [vmem:[%s3 + $0xc] sm:$0xf]
        %v272 = vld [vmem:[%s2] sm:$0xff]
        %v273 = vld [vmem:[%s2 + $0x8] sm:$0xff]
        %v274 = vld [vmem:[%s2 + $0x10] sm:$0xff]
        %v275 = vld [vmem:[%s2 + $0x18] sm:$0xff]
        %v276 = vld [vmem:[%s4] sm:$0xff]
        %v277 = vld [vmem:[%s4 + $0x8] sm:$0xff]
        %v278 = vld [vmem:[%s4 + $0x10] sm:$0xff]
        %v279 = vld [vmem:[%s4 + $0x18] sm:$0xff]
        %v280 = vld [vmem:[%s234] sm:$0xff]
        %v281 = vld [vmem:[%s234 + $0x8] sm:$0xff]
        %v282 = vld [vmem:[%s234 + $0x10] sm:$0xff]
        %v283 = vld [vmem:[%s234 + $0x18] sm:$0xff]
        %v284 = vld [vmem:[%s234 + $0x20] sm:$0xff]
        %v285 = vld [vmem:[%s234 + $0x28] sm:$0xff]
        %v286 = vld [vmem:[%s234 + $0x30] sm:$0xff]
        %v287 = vld [vmem:[%s234 + $0x38] sm:$0xff]
        %v288 = vld [vmem:[%s234 + $0x40] sm:$0xff]
        %v289 = vld [vmem:[%s234 + $0x48] sm:$0xff]
        %v290 = vld [vmem:[%s234 + $0x50] sm:$0xff]
        %v291 = vld [vmem:[%s234 + $0x58] sm:$0xff]
        %v292 = vld [vmem:[%s234 + $0x60] sm:$0xff]
        %v293 = vld [vmem:[%s234 + $0x68] sm:$0xff]
        %v294 = vld [vmem:[%s234 + $0x70] sm:$0xff]
        %v295 = vld [vmem:[%s234 + $0x78] sm:$0xff]
        %v296 = vld [vmem:[%s234 + $0x80] sm:$0xff]
        %v297 = vld [vmem:[%s234 + $0x88] sm:$0xff]
        %v298 = vld [vmem:[%s234 + $0x90] sm:$0xff]
        %v299 = vld [vmem:[%s234 + $0x98] sm:$0xff]
        %v300 = vpack.c.bf16 %v285, %v280
        %v301 = vpack.c.bf16 %v286, %v281
        %v302 = vpack.c.bf16 %v287, %v282
        %v303 = vpack.c.bf16 %v288, %v283
        %v304 = vpack.c.bf16 %v289, %v284
        %v305 = vpack.c.bf16 %v295, %v290
        %v306 = vpack.c.bf16 %v296, %v291
        %v307 = vpack.c.bf16 %v297, %v292
        %v308 = vpack.c.bf16 %v298, %v293
        %v309 = vpack.c.bf16 %v299, %v294
        %311 = vset.pattern.permute.xlu0 0
        %312 = vperm.xlu0 %311, %v272
        %v313 = vpop.permute.xlu0 %312
        %316 = vset.pattern.permute.xlu0 0
        %317 = vperm.xlu0 %316, %v273
        %v318 = vpop.permute.xlu0 %317
        %321 = vset.pattern.permute.xlu0 0
        %322 = vperm.xlu0 %321, %v274
        %v323 = vpop.permute.xlu0 %322
        %326 = vset.pattern.permute.xlu0 0
        %327 = vperm.xlu0 %326, %v275
        %v328 = vpop.permute.xlu0 %327
        %v334 = vunpack.c.l.b16 %v264
        %v335 = vunpack.c.l.b16 %v265
        %v336 = vunpack.c.l.b16 %v266
        %v337 = vunpack.c.l.b16 %v267
        %v338 = vpack.c.b16 %v335, %v334
        %v339 = vpack.c.b16 %v337, %v336
        %vm340 = vcmask 261120
        %v342 = vsel %vm340, %v338, 0
        %v345 = vsel %vm340, %v339, 0
        %347 = vmatprep.subr.bf16.mxu0 %v301
        %348 = vmatpush1.bf16.msra.mxu0 %v300
        %349 = vmatprep.subr.bf16.mxu0 %v306
        %350 = vmatpush1.bf16.msra.mxu0 %v305
        %351 = vmatprep.subr.bf16.mxu0 0
        %352 = vmatpush1.bf16.msra.mxu0 0
        %353 = vmatprep.subr.bf16.mxu0 0
        %354 = vmatpush1.bf16.msra.mxu0 0
        %355 = vmatprep.subr.bf16.mxu0 0
        %356 = vmatpush1.bf16.msra.mxu0 0
        %357 = vmatprep.subr.bf16.mxu0 0
        %358 = vmatpush1.bf16.msra.mxu0 0
        %359 = vmatprep.subr.bf16.mxu0 0
        %360 = vmatpush1.bf16.msra.mxu0 0
        %361 = vmatprep.subr.bf16.mxu0 0
        %362 = vmatpush1.bf16.msra.mxu0 0
        %363 = vmatprep.subr.bf16.mxu0 0
        %364 = vmatpush1.bf16.msra.mxu0 0
        %365 = vmatprep.subr.bf16.mxu0 0
        %366 = vmatpush1.bf16.msra.mxu0 0
        %367 = vmatprep.subr.bf16.mxu0 0
        %368 = vmatpush1.bf16.msra.mxu0 0
        %369 = vmatprep.subr.bf16.mxu0 0
        %370 = vmatpush1.bf16.msra.mxu0 0
        %371 = vmatprep.subr.bf16.mxu0 0
        %372 = vmatpush1.bf16.msra.mxu0 0
        %373 = vmatprep.subr.bf16.mxu0 0
        %374 = vmatpush1.bf16.msra.mxu0 0
        %375 = vmatprep.subr.bf16.mxu0 0
        %376 = vmatpush1.bf16.msra.mxu0 0
        %377 = vmatprep.subr.bf16.mxu0 0
        %378 = vmatpush1.bf16.msra.mxu0 0
        %379 = vmatprep.mubr.bf16.mxu0 0
        %380 = vmatmul.mubr.bf16.gmra.mrb[0].mxu0 %v342
        %v381 = vpop.f32.mrb[0].mxu0
        %v382 = vadd.f32 %v313, %v381
        %v383 = vpop.f32.mrb[0].mxu0
        %v384 = vadd.f32 %v313, %v383
        %v385 = vpop.f32.mrb[0].mxu0
        %v386 = vadd.f32 %v318, %v385
        %v387 = vpop.f32.mrb[0].mxu0
        %v388 = vadd.f32 %v318, %v387
        %389 = vmatprep.mubr.bf16.mxu0 0
        %390 = vmatmul.mubr.bf16.gmra.mrb[0].mxu0 %v345
        %v391 = vpop.f32.mrb[0].mxu0
        %v392 = vadd.f32 %v323, %v391
        %v393 = vpop.f32.mrb[0].mxu0
        %v394 = vadd.f32 %v323, %v393
        %v395 = vpop.f32.mrb[0].mxu0
        %v396 = vadd.f32 %v328, %v395
        %v397 = vpop.f32.mrb[0].mxu0
        %v398 = vadd.f32 %v328, %v397
        %399 = vdwg.mxu0
        %400 = vmatprep.subr.bf16.mxu0 %v303
        %401 = vmatpush1.bf16.msra.mxu0 %v302
        %402 = vmatprep.subr.bf16.mxu0 %v308
        %403 = vmatpush1.bf16.msra.mxu0 %v307
        %404 = vmatprep.subr.bf16.mxu0 0
        %405 = vmatpush1.bf16.msra.mxu0 0
        %406 = vmatprep.subr.bf16.mxu0 0
        %407 = vmatpush1.bf16.msra.mxu0 0
        %408 = vmatprep.subr.bf16.mxu0 0
        %409 = vmatpush1.bf16.msra.mxu0 0
        %410 = vmatprep.subr.bf16.mxu0 0
        %411 = vmatpush1.bf16.msra.mxu0 0
        %412 = vmatprep.subr.bf16.mxu0 0
        %413 = vmatpush1.bf16.msra.mxu0 0
        %414 = vmatprep.subr.bf16.mxu0 0
        %415 = vmatpush1.bf16.msra.mxu0 0
        %416 = vmatprep.subr.bf16.mxu0 0
        %417 = vmatpush1.bf16.msra.mxu0 0
        %418 = vmatprep.subr.bf16.mxu0 0
        %419 = vmatpush1.bf16.msra.mxu0 0
        %420 = vmatprep.subr.bf16.mxu0 0
        %421 = vmatpush1.bf16.msra.mxu0 0
        %422 = vmatprep.subr.bf16.mxu0 0
        %423 = vmatpush1.bf16.msra.mxu0 0
        %424 = vmatprep.subr.bf16.mxu0 0
        %425 = vmatpush1.bf16.msra.mxu0 0
        %426 = vmatprep.subr.bf16.mxu0 0
        %427 = vmatpush1.bf16.msra.mxu0 0
        %428 = vmatprep.subr.bf16.mxu0 0
        %429 = vmatpush1.bf16.msra.mxu0 0
        %430 = vmatprep.subr.bf16.mxu0 0
        %431 = vmatpush1.bf16.msra.mxu0 0
        %432 = vmatprep.mubr.bf16.mxu0 0
        %433 = vmatmul.mubr.bf16.gmra.mrb[0].mxu0 %v342
        %v434 = vpop.f32.mrb[0].mxu0
        %v435 = vadd.f32 %v313, %v434
        %v436 = vpop.f32.mrb[0].mxu0
        %v437 = vadd.f32 %v313, %v436
        %v438 = vpop.f32.mrb[0].mxu0
        %v439 = vadd.f32 %v318, %v438
        %v440 = vpop.f32.mrb[0].mxu0
        %v441 = vadd.f32 %v318, %v440
        %442 = vmatprep.mubr.bf16.mxu0 0
        %443 = vmatmul.mubr.bf16.gmra.mrb[0].mxu0 %v345
        %v444 = vpop.f32.mrb[0].mxu0
        %v445 = vadd.f32 %v323, %v444
        %v446 = vpop.f32.mrb[0].mxu0
        %v447 = vadd.f32 %v323, %v446
        %v448 = vpop.f32.mrb[0].mxu0
        %v449 = vadd.f32 %v328, %v448
        %v450 = vpop.f32.mrb[0].mxu0
        %v451 = vadd.f32 %v328, %v450
        %452 = vdwg.mxu0
        %453 = vmatprep.subr.bf16.mxu0 0
        %454 = vmatpush1.bf16.msra.mxu0 %v304
        %455 = vmatprep.subr.bf16.mxu0 0
        %456 = vmatpush1.bf16.msra.mxu0 %v309
        %457 = vmatprep.subr.bf16.mxu0 0
        %458 = vmatpush1.bf16.msra.mxu0 0
        %459 = vmatprep.subr.bf16.mxu0 0
        %460 = vmatpush1.bf16.msra.mxu0 0
        %461 = vmatprep.subr.bf16.mxu0 0
        %462 = vmatpush1.bf16.msra.mxu0 0
        %463 = vmatprep.subr.bf16.mxu0 0
        %464 = vmatpush1.bf16.msra.mxu0 0
        %465 = vmatprep.subr.bf16.mxu0 0
        %466 = vmatpush1.bf16.msra.mxu0 0
        %467 = vmatprep.subr.bf16.mxu0 0
        %468 = vmatpush1.bf16.msra.mxu0 0
        %469 = vmatprep.subr.bf16.mxu0 0
        %470 = vmatpush1.bf16.msra.mxu0 0
        %471 = vmatprep.subr.bf16.mxu0 0
        %472 = vmatpush1.bf16.msra.mxu0 0
        %473 = vmatprep.subr.bf16.mxu0 0
        %474 = vmatpush1.bf16.msra.mxu0 0
        %475 = vmatprep.subr.bf16.mxu0 0
        %476 = vmatpush1.bf16.msra.mxu0 0
        %477 = vmatprep.subr.bf16.mxu0 0
        %478 = vmatpush1.bf16.msra.mxu0 0
        %479 = vmatprep.subr.bf16.mxu0 0
        %480 = vmatpush1.bf16.msra.mxu0 0
        %481 = vmatprep.subr.bf16.mxu0 0
        %482 = vmatpush1.bf16.msra.mxu0 0
        %483 = vmatprep.subr.bf16.mxu0 0
        %484 = vmatpush1.bf16.msra.mxu0 0
        %485 = vmatprep.mubr.bf16.mxu0 0
        %486 = vmatmul.mubr.bf16.gmra.mrb[0].mxu0 %v342
        %v487 = vpop.f32.mrb[0].mxu0
        %v488 = vadd.f32 %v313, %v487
        %v489 = vpop.f32.mrb[0].mxu0
        %v490 = vpop.f32.mrb[0].mxu0
        %v491 = vadd.f32 %v318, %v490
        %v492 = vpop.f32.mrb[0].mxu0
        %493 = vmatprep.mubr.bf16.mxu0 0
        %494 = vmatmul.mubr.bf16.gmra.mrb[0].mxu0 %v345
        %v495 = vpop.f32.mrb[0].mxu0
        %v496 = vadd.f32 %v323, %v495
        %v497 = vpop.f32.mrb[0].mxu0
        %v498 = vpop.f32.mrb[0].mxu0
        %v499 = vadd.f32 %v328, %v498
        %v500 = vpop.f32.mrb[0].mxu0
        %501 = vdwg.mxu0
        %v502 = vmax.f32 %v382, 0.0
        %v503 = vmax.f32 %v384, 0.0
        %v504 = vmax.f32 %v435, 0.0
        %v505 = vmax.f32 %v437, 0.0
        %v506 = vmax.f32 %v488, 0.0
        %v507 = vmax.f32 %v386, 0.0
        %v508 = vmax.f32 %v388, 0.0
        %v509 = vmax.f32 %v439, 0.0
        %v510 = vmax.f32 %v441, 0.0
        %v511 = vmax.f32 %v491, 0.0
        %v512 = vmax.f32 %v392, 0.0
        %v513 = vmax.f32 %v394, 0.0
        %v514 = vmax.f32 %v445, 0.0
        %v515 = vmax.f32 %v447, 0.0
        %v516 = vmax.f32 %v496, 0.0
        %v517 = vmax.f32 %v396, 0.0
        %v518 = vmax.f32 %v398, 0.0
        %v519 = vmax.f32 %v449, 0.0
        %v520 = vmax.f32 %v451, 0.0
        %v521 = vmax.f32 %v499, 0.0
        %v522 = vpack.c.bf16 %v507, %v502
        %v523 = vpack.c.bf16 %v508, %v503
        %v524 = vpack.c.bf16 %v509, %v504
        %v525 = vpack.c.bf16 %v510, %v505
        %v526 = vpack.c.bf16 %v511, %v506
        %v527 = vpack.c.bf16 %v517, %v512
        %v528 = vpack.c.bf16 %v518, %v513
        %v529 = vpack.c.bf16 %v519, %v514
        %v530 = vpack.c.bf16 %v520, %v515
        %v531 = vpack.c.bf16 %v521, %v516
        %533 = vset.pattern.permute.xlu0 0
        %534 = vperm.xlu0 %533, %v276
        %v535 = vpop.permute.xlu0 %534
        %538 = vset.pattern.permute.xlu0 0
        %539 = vperm.xlu0 %538, %v277
        %v540 = vpop.permute.xlu0 %539
        %543 = vset.pattern.permute.xlu0 0
        %544 = vperm.xlu0 %543, %v278
        %v545 = vpop.permute.xlu0 %544
        %548 = vset.pattern.permute.xlu0 0
        %549 = vperm.xlu0 %548, %v279
        %v550 = vpop.permute.xlu0 %549
        %v556 = vunpack.c.l.b16 %v268
        %v557 = vunpack.c.l.b16 %v269
        %v558 = vunpack.c.l.b16 %v270
        %v559 = vunpack.c.l.b16 %v271
        %v560 = vpack.c.b16 %v557, %v556
        %v561 = vpack.c.b16 %v559, %v558
        %v563 = vsel %vm340, %v560, 0
        %v566 = vsel %vm340, %v561, 0
        %568 = vmatprep.subr.bf16.mxu0 %v523
        %569 = vmatpush1.bf16.msra.mxu0 %v522
        %570 = vmatprep.subr.bf16.mxu0 %v528
        %571 = vmatpush1.bf16.msra.mxu0 %v527
        %572 = vmatprep.subr.bf16.mxu0 0
        %573 = vmatpush1.bf16.msra.mxu0 0
        %574 = vmatprep.subr.bf16.mxu0 0
        %575 = vmatpush1.bf16.msra.mxu0 0
        %576 = vmatprep.subr.bf16.mxu0 0
        %577 = vmatpush1.bf16.msra.mxu0 0
        %578 = vmatprep.subr.bf16.mxu0 0
        %579 = vmatpush1.bf16.msra.mxu0 0
        %580 = vmatprep.subr.bf16.mxu0 0
        %581 = vmatpush1.bf16.msra.mxu0 0
        %582 = vmatprep.subr.bf16.mxu0 0
        %583 = vmatpush1.bf16.msra.mxu0 0
        %584 = vmatprep.subr.bf16.mxu0 0
        %585 = vmatpush1.bf16.msra.mxu0 0
        %586 = vmatprep.subr.bf16.mxu0 0
        %587 = vmatpush1.bf16.msra.mxu0 0
        %588 = vmatprep.subr.bf16.mxu0 0
        %589 = vmatpush1.bf16.msra.mxu0 0
        %590 = vmatprep.subr.bf16.mxu0 0
        %591 = vmatpush1.bf16.msra.mxu0 0
        %592 = vmatprep.subr.bf16.mxu0 0
        %593 = vmatpush1.bf16.msra.mxu0 0
        %594 = vmatprep.subr.bf16.mxu0 0
        %595 = vmatpush1.bf16.msra.mxu0 0
        %596 = vmatprep.subr.bf16.mxu0 0
        %597 = vmatpush1.bf16.msra.mxu0 0
        %598 = vmatprep.subr.bf16.mxu0 0
        %599 = vmatpush1.bf16.msra.mxu0 0
        %600 = vmatprep.mubr.bf16.mxu0 0
        %601 = vmatmul.mubr.bf16.gmra.mrb[0].mxu0 %v563
        %v602 = vpop.f32.mrb[0].mxu0
        %v603 = vadd.f32 %v535, %v602
        %v604 = vpop.f32.mrb[0].mxu0
        %v605 = vadd.f32 %v535, %v604
        %v606 = vpop.f32.mrb[0].mxu0
        %v607 = vadd.f32 %v540, %v606
        %v608 = vpop.f32.mrb[0].mxu0
        %v609 = vadd.f32 %v540, %v608
        %610 = vmatprep.mubr.bf16.mxu0 0
        %611 = vmatmul.mubr.bf16.gmra.mrb[0].mxu0 %v566
        %v612 = vpop.f32.mrb[0].mxu0
        %v613 = vadd.f32 %v545, %v612
        %v614 = vpop.f32.mrb[0].mxu0
        %v615 = vadd.f32 %v545, %v614
        %v616 = vpop.f32.mrb[0].mxu0
        %v617 = vadd.f32 %v550, %v616
        %v618 = vpop.f32.mrb[0].mxu0
        %v619 = vadd.f32 %v550, %v618
        %620 = vdwg.mxu0
        %621 = vmatprep.subr.bf16.mxu0 %v525
        %622 = vmatpush1.bf16.msra.mxu0 %v524
        %623 = vmatprep.subr.bf16.mxu0 %v530
        %624 = vmatpush1.bf16.msra.mxu0 %v529
        %625 = vmatprep.subr.bf16.mxu0 0
        %626 = vmatpush1.bf16.msra.mxu0 0
        %627 = vmatprep.subr.bf16.mxu0 0
        %628 = vmatpush1.bf16.msra.mxu0 0
        %629 = vmatprep.subr.bf16.mxu0 0
        %630 = vmatpush1.bf16.msra.mxu0 0
        %631 = vmatprep.subr.bf16.mxu0 0
        %632 = vmatpush1.bf16.msra.mxu0 0
        %633 = vmatprep.subr.bf16.mxu0 0
        %634 = vmatpush1.bf16.msra.mxu0 0
        %635 = vmatprep.subr.bf16.mxu0 0
        %636 = vmatpush1.bf16.msra.mxu0 0
        %637 = vmatprep.subr.bf16.mxu0 0
        %638 = vmatpush1.bf16.msra.mxu0 0
        %639 = vmatprep.subr.bf16.mxu0 0
        %640 = vmatpush1.bf16.msra.mxu0 0
        %641 = vmatprep.subr.bf16.mxu0 0
        %642 = vmatpush1.bf16.msra.mxu0 0
        %643 = vmatprep.subr.bf16.mxu0 0
        %644 = vmatpush1.bf16.msra.mxu0 0
        %645 = vmatprep.subr.bf16.mxu0 0
        %646 = vmatpush1.bf16.msra.mxu0 0
        %647 = vmatprep.subr.bf16.mxu0 0
        %648 = vmatpush1.bf16.msra.mxu0 0
        %649 = vmatprep.subr.bf16.mxu0 0
        %650 = vmatpush1.bf16.msra.mxu0 0
        %651 = vmatprep.subr.bf16.mxu0 0
        %652 = vmatpush1.bf16.msra.mxu0 0
        %653 = vmatprep.mubr.bf16.mxu0 0
        %654 = vmatmul.mubr.bf16.gmra.mrb[0].mxu0 %v563
        %v655 = vpop.f32.mrb[0].mxu0
        %v656 = vadd.f32 %v535, %v655
        %v657 = vpop.f32.mrb[0].mxu0
        %v658 = vadd.f32 %v535, %v657
        %v659 = vpop.f32.mrb[0].mxu0
        %v660 = vadd.f32 %v540, %v659
        %v661 = vpop.f32.mrb[0].mxu0
        %v662 = vadd.f32 %v540, %v661
        %663 = vmatprep.mubr.bf16.mxu0 0
        %664 = vmatmul.mubr.bf16.gmra.mrb[0].mxu0 %v566
        %v665 = vpop.f32.mrb[0].mxu0
        %v666 = vadd.f32 %v545, %v665
        %v667 = vpop.f32.mrb[0].mxu0
        %v668 = vadd.f32 %v545, %v667
        %v669 = vpop.f32.mrb[0].mxu0
        %v670 = vadd.f32 %v550, %v669
        %v671 = vpop.f32.mrb[0].mxu0
        %v672 = vadd.f32 %v550, %v671
        %673 = vdwg.mxu0
        %674 = vmatprep.subr.bf16.mxu0 0
        %675 = vmatpush1.bf16.msra.mxu0 %v526
        %676 = vmatprep.subr.bf16.mxu0 0
        %677 = vmatpush1.bf16.msra.mxu0 %v531
        %678 = vmatprep.subr.bf16.mxu0 0
        %679 = vmatpush1.bf16.msra.mxu0 0
        %680 = vmatprep.subr.bf16.mxu0 0
        %681 = vmatpush1.bf16.msra.mxu0 0
        %682 = vmatprep.subr.bf16.mxu0 0
        %683 = vmatpush1.bf16.msra.mxu0 0
        %684 = vmatprep.subr.bf16.mxu0 0
        %685 = vmatpush1.bf16.msra.mxu0 0
        %686 = vmatprep.subr.bf16.mxu0 0
        %687 = vmatpush1.bf16.msra.mxu0 0
        %688 = vmatprep.subr.bf16.mxu0 0
        %689 = vmatpush1.bf16.msra.mxu0 0
        %690 = vmatprep.subr.bf16.mxu0 0
        %691 = vmatpush1.bf16.msra.mxu0 0
        %692 = vmatprep.subr.bf16.mxu0 0
        %693 = vmatpush1.bf16.msra.mxu0 0
        %694 = vmatprep.subr.bf16.mxu0 0
        %695 = vmatpush1.bf16.msra.mxu0 0
        %696 = vmatprep.subr.bf16.mxu0 0
        %697 = vmatpush1.bf16.msra.mxu0 0
        %698 = vmatprep.subr.bf16.mxu0 0
        %699 = vmatpush1.bf16.msra.mxu0 0
        %700 = vmatprep.subr.bf16.mxu0 0
        %701 = vmatpush1.bf16.msra.mxu0 0
        %702 = vmatprep.subr.bf16.mxu0 0
        %703 = vmatpush1.bf16.msra.mxu0 0
        %704 = vmatprep.subr.bf16.mxu0 0
        %705 = vmatpush1.bf16.msra.mxu0 0
        %706 = vmatprep.mubr.bf16.mxu0 0
        %707 = vmatmul.mubr.bf16.gmra.mrb[0].mxu0 %v563
        %v708 = vpop.f32.mrb[0].mxu0
        %v709 = vadd.f32 %v535, %v708
        %v710 = vpop.f32.mrb[0].mxu0
        %v711 = vpop.f32.mrb[0].mxu0
        %v712 = vadd.f32 %v540, %v711
        %v713 = vpop.f32.mrb[0].mxu0
        %714 = vmatprep.mubr.bf16.mxu0 0
        %715 = vmatmul.mubr.bf16.gmra.mrb[0].mxu0 %v566
        %v716 = vpop.f32.mrb[0].mxu0
        %v717 = vadd.f32 %v545, %v716
        %v718 = vpop.f32.mrb[0].mxu0
        %v719 = vpop.f32.mrb[0].mxu0
        %v720 = vadd.f32 %v550, %v719
        %v721 = vpop.f32.mrb[0].mxu0
        %722 = vdwg.mxu0
        %v723 = vsub.f32 0.0, %v603
        %v724 = vsub.f32 0.0, %v605
        %v725 = vsub.f32 0.0, %v656
        %v726 = vsub.f32 0.0, %v658
        %v727 = vsub.f32 0.0, %v709
        %v728 = vsub.f32 0.0, %v607
        %v729 = vsub.f32 0.0, %v609
        %v730 = vsub.f32 0.0, %v660
        %v731 = vsub.f32 0.0, %v662
        %v732 = vsub.f32 0.0, %v712
        %v733 = vsub.f32 0.0, %v613
        %v734 = vsub.f32 0.0, %v615
        %v735 = vsub.f32 0.0, %v666
        %v736 = vsub.f32 0.0, %v668
        %v737 = vsub.f32 0.0, %v717
        %v738 = vsub.f32 0.0, %v617
        %v739 = vsub.f32 0.0, %v619
        %v740 = vsub.f32 0.0, %v670
        %v741 = vsub.f32 0.0, %v672
        %v742 = vsub.f32 0.0, %v720
        %v743 = vmul.f32 %v723, 1.442695
        %v744 = vpow.pop %v743
        %v745 = vmul.f32 %v724, 1.442695
        %v746 = vpow.pop %v745
        %v747 = vmul.f32 %v725, 1.442695
        %v748 = vpow.pop %v747
        %v749 = vmul.f32 %v726, 1.442695
        %v750 = vpow.pop %v749
        %v751 = vmul.f32 %v727, 1.442695
        %v752 = vpow.pop %v751
        %v753 = vmul.f32 %v728, 1.442695
        %v754 = vpow.pop %v753
        %v755 = vmul.f32 %v729, 1.442695
        %v756 = vpow.pop %v755
        %v757 = vmul.f32 %v730, 1.442695
        %v758 = vpow.pop %v757
        %v759 = vmul.f32 %v731, 1.442695
        %v760 = vpow.pop %v759
        %v761 = vmul.f32 %v732, 1.442695
        %v762 = vpow.pop %v761
        %v763 = vmul.f32 %v733, 1.442695
        %v764 = vpow.pop %v763
        %v765 = vmul.f32 %v734, 1.442695
        %v766 = vpow.pop %v765
        %v767 = vmul.f32 %v735, 1.442695
        %v768 = vpow.pop %v767
        %v769 = vmul.f32 %v736, 1.442695
        %v770 = vpow.pop %v769
        %v771 = vmul.f32 %v737, 1.442695
        %v772 = vpow.pop %v771
        %v773 = vmul.f32 %v738, 1.442695
        %v774 = vpow.pop %v773
        %v775 = vmul.f32 %v739, 1.442695
        %v776 = vpow.pop %v775
        %v777 = vmul.f32 %v740, 1.442695
        %v778 = vpow.pop %v777
        %v779 = vmul.f32 %v741, 1.442695
        %v780 = vpow.pop %v779
        %v781 = vmul.f32 %v742, 1.442695
        %v782 = vpow.pop %v781
        %v783 = vadd.f32 %v744, 1.0
        %v784 = vadd.f32 %v746, 1.0
        %v785 = vadd.f32 %v748, 1.0
        %v786 = vadd.f32 %v750, 1.0
        %v787 = vadd.f32 %v752, 1.0
        %v788 = vadd.f32 %v754, 1.0
        %v789 = vadd.f32 %v756, 1.0
        %v790 = vadd.f32 %v758, 1.0
        %v791 = vadd.f32 %v760, 1.0
        %v792 = vadd.f32 %v762, 1.0
        %v793 = vadd.f32 %v764, 1.0
        %v794 = vadd.f32 %v766, 1.0
        %v795 = vadd.f32 %v768, 1.0
        %v796 = vadd.f32 %v770, 1.0
        %v797 = vadd.f32 %v772, 1.0
        %v798 = vadd.f32 %v774, 1.0
        %v799 = vadd.f32 %v776, 1.0
        %v800 = vadd.f32 %v778, 1.0
        %v801 = vadd.f32 %v780, 1.0
        %v802 = vadd.f32 %v782, 1.0
        %v803 = vrcp.pop %v783
        %v804 = vrcp.pop %v784
        %v805 = vrcp.pop %v785
        %v806 = vrcp.pop %v786
        %v807 = vrcp.pop %v787
        %v808 = vrcp.pop %v788
        %v809 = vrcp.pop %v789
        %v810 = vrcp.pop %v790
        %v811 = vrcp.pop %v791
        %v812 = vrcp.pop %v792
        %v813 = vrcp.pop %v793
        %v814 = vrcp.pop %v794
        %v815 = vrcp.pop %v795
        %v816 = vrcp.pop %v796
        %v817 = vrcp.pop %v797
        %v818 = vrcp.pop %v798
        %v819 = vrcp.pop %v799
        %v820 = vrcp.pop %v800
        %v821 = vrcp.pop %v801
        %v822 = vrcp.pop %v802
        %823 = vst [vmem:[%s260] sm:$0xff] %v803
        %824 = vst [vmem:[%s260 + $0x8] sm:$0xff] %v804
        %825 = vst [vmem:[%s260 + $0x10] sm:$0xff] %v805
        %826 = vst [vmem:[%s260 + $0x18] sm:$0xff] %v806
        %vm827 = vcmask 719872
        %828 = vst.msk [vmem:[%s260 + $0x20] sm:$0xff] %vm827, %v807
        %829 = vst [vmem:[%s260 + $0x28] sm:$0xff] %v808
        %830 = vst [vmem:[%s260 + $0x30] sm:$0xff] %v809
        %831 = vst [vmem:[%s260 + $0x38] sm:$0xff] %v810
        %832 = vst [vmem:[%s260 + $0x40] sm:$0xff] %v811
        %833 = vst.msk [vmem:[%s260 + $0x48] sm:$0xff] %vm827, %v812
        %834 = vst [vmem:[%s260 + $0x50] sm:$0xff] %v813
        %835 = vst [vmem:[%s260 + $0x58] sm:$0xff] %v814
        %836 = vst [vmem:[%s260 + $0x60] sm:$0xff] %v815
        %837 = vst [vmem:[%s260 + $0x68] sm:$0xff] %v816
        %838 = vst.msk [vmem:[%s260 + $0x70] sm:$0xff] %vm827, %v817
        %839 = vst [vmem:[%s260 + $0x78] sm:$0xff] %v818
        %840 = vst [vmem:[%s260 + $0x80] sm:$0xff] %v819
        %841 = vst [vmem:[%s260 + $0x88] sm:$0xff] %v820
        %842 = vst [vmem:[%s260 + $0x90] sm:$0xff] %v821
        %843 = vst.msk [vmem:[%s260 + $0x98] sm:$0xff] %vm827, %v822
        %s844 = sand.u32 %s156, 1
        %s845 = scalar_lea.sflag [#allocation4], %s844
        %s846 = sand.u32 %s156, 1
        %s847 = smul.addr %s846, 160
        %s848 = scalar_lea.vmem [#allocation5], %s847
        // Predicated region
        $region45: #{tpu_custom_call.1} parent=39 // pred_check
          %p849 = pneg %p166
        $region46: #{tpu_custom_call.1} parent=39 // pred_check_branch
          %851 = sbr.rel (%p849) target = $region48
        $region47: #{tpu_custom_call.1} parent=39 // pred_region
          %s852 = smul.u32 5, %s27
          %s854 = ssub.s32 2560, 2560
          %855 = vsyncadd %s845, %s854
          %s856 = smul.addr %s26, 20
          %s857 = sadd.s32 %s852, %s856
          %s858 = smul.addr %s857, 128
          %s859 = scalar_lea.hbm %s5, %s858
          %s860 = sshll.u32 %s848, 4
          %s861 = int_to_ptr.vmem [resolvable:$true] %s860
          %866 = dma.vmem_to_hbm [thread:$0]  %s861, 2560, %s859, %s845, 640, 640, 40
        $region48: #{tpu_custom_call.1} parent=39 // pred_fallthru
          _
      $region40: #{tpu_custom_call.1} parent=5 // pred_fallthru
        _
      %p867 = scmp.le.s32.totalorder 2, %s17
      // Predicated region
      $region49: #{tpu_custom_call.1} parent=5 // pred_check
        %p868 = pneg %p867
      $region50: #{tpu_custom_call.1} parent=5 // pred_check_branch
        %870 = sbr.rel (%p868) target = $region52
      $region51: #{tpu_custom_call.1} parent=5 // pred_region
        %s871 = ssub.s32 %s17, 2
        // Predicated region
        $region53: #{tpu_custom_call.1} parent=51 // pred_check
          %p872 = pneg %p172
        $region54: #{tpu_custom_call.1} parent=51 // pred_check_branch
          %874 = sbr.rel (%p872) target = $region56
        $region55: #{tpu_custom_call.1} parent=51 // pred_region
          %s875 = sand.u32 %s157, 1
          %s876 = scalar_lea.sflag [#allocation4], %s875
          %s877 = sand.u32 %s157, 1
          %s878 = smul.addr %s877, 160
          %s879 = scalar_lea.vmem [#allocation5], %s878
          %880 = dma.done %s876, 2560
        $region56: #{tpu_custom_call.1} parent=51 // pred_fallthru
          _
      $region52: #{tpu_custom_call.1} parent=5 // pred_fallthru
        _
    $region6: #{tpu_custom_call.1} parent=1 // loop_footer
      %s21 = sadd.s32 1, %s17
    $region7: #{tpu_custom_call.1} parent=1 // loop_footer_branch
      %16 = sbr.rel target = $region3
    $region8: #{tpu_custom_call.1} parent=1 // loop_exit
      _
    %881 = vsyncpa [#allocation3], 1
    %s882 = scalar_lea.sflag [#allocation3], 1
    %883 = vsyncpa %s882, 1
    %884 = vsyncpa [#allocation4], 1
    %s885 = scalar_lea.sflag [#allocation4], 1
    %886 = vsyncpa %s885, 1

</llo_original>
